<compile_context>
chip_gen: v7x
topology: tpu7x:2x2x1
jax: 0.10.0
libtpu: 0.0.40
codegen_flags: <defaults>
</compile_context>

<pallas_src>
import math

import jax
import jax.numpy as jnp
from jax.experimental import pallas as pl
from jax.experimental.pallas import tpu as pltpu

INPUT_DIM = 28 * 28          # 784
HIDDEN_DIM = INPUT_DIM // 4  # 196
OUTPUT_DIM = 10

HIDDEN_PAD = 256             # 196 -> two full 128-lane vregs
OUT_PAD = 128                # 10  -> lane-dense output block


def _round_up(x, m):
    return ((x + m - 1) // m) * m


def _mlp_kernel(x_ref, w1_ref, b1_ref, w2_ref, b2_ref, o_ref):
    # Layer 1: (TB, 784) @ (784, 256) on the MXU, bf16 operands, f32 acc.
    x = x_ref[...].astype(jnp.bfloat16)
    h = jnp.dot(x, w1_ref[...], preferred_element_type=jnp.float32)
    h = h + b1_ref[...]                                   # f32 bias (VPU)
    # Sigmoid in f32: exp -> EUP, approx reciprocal -> EUP (VALU stays free).
    h = pl.reciprocal(1.0 + jnp.exp(-h), approx=True)
    # Layer 2: (TB, 256) @ (256, 128), lane-dense output write.
    out = jnp.dot(h.astype(jnp.bfloat16), w2_ref[...],
                  preferred_element_type=jnp.float32)
    out = out + b2_ref[...]
    o_ref[...] = out.astype(o_ref.dtype)


def _pad_params(w1, b1, w2, b2):
    """Zero-pad params to (8,128)-aligned shapes; weights stored bf16."""
    w1p = jnp.pad(w1, ((0, 0), (0, HIDDEN_PAD - HIDDEN_DIM))).astype(jnp.bfloat16)
    b1p = jnp.pad(b1, ((0, 0), (0, HIDDEN_PAD - HIDDEN_DIM))).astype(jnp.float32)
    w2p = jnp.pad(w2, ((0, HIDDEN_PAD - HIDDEN_DIM),
                       (0, OUT_PAD - OUTPUT_DIM))).astype(jnp.bfloat16)
    b2p = jnp.pad(b2, ((0, 0), (0, OUT_PAD - OUTPUT_DIM))).astype(jnp.float32)
    return w1p, b1p, w2p, b2p


def forward_net(x, w1, b1, w2, b2, *, block_b=1024):
    """Fused forward pass of ForwardNetModel.

    Args:
      x:  (B, INPUT_DIM) float32
      w1: (INPUT_DIM, HIDDEN_DIM)   -- transpose of nn.Linear.weight
      b1: (1, HIDDEN_DIM)
      w2: (HIDDEN_DIM, OUTPUT_DIM)  -- transpose of nn.Linear.weight
      b2: (1, OUTPUT_DIM)
      block_b: batch tile size (rows per grid step).
    Returns:
      (B, OUTPUT_DIM) float32
    """
    B = x.shape[0]
    w1p, b1p, w2p, b2p = _pad_params(w1, b1, w2, b2)

    # Batch tile: multiple of 8 sublanes, no bigger than the (rounded) batch.
    tb = min(_round_up(block_b, 8), _round_up(B, 8))
    b_pad = _round_up(B, tb)
    if b_pad != B:
        x = jnp.pad(x, ((0, b_pad - B), (0, 0)))

    grid = (b_pad // tb,)

    out_padded = pl.pallas_call(
        _mlp_kernel,
        out_shape=jax.ShapeDtypeStruct((b_pad, OUT_PAD), jnp.float32),
        grid=grid,
        in_specs=[
            # x streams per batch tile (double-buffered by the pipeline).
            pl.BlockSpec((tb, INPUT_DIM), lambda i: (i, 0)),
            # Weights / biases stay resident in VMEM across all grid steps.
            pl.BlockSpec((INPUT_DIM, HIDDEN_PAD), lambda i: (0, 0)),
            pl.BlockSpec((1, HIDDEN_PAD), lambda i: (0, 0)),
            pl.BlockSpec((HIDDEN_PAD, OUT_PAD), lambda i: (0, 0)),
            pl.BlockSpec((1, OUT_PAD), lambda i: (0, 0)),
        ],
        out_specs=pl.BlockSpec((tb, OUT_PAD), lambda i: (i, 0)),
        compiler_params=pltpu.CompilerParams(
            dimension_semantics=("parallel",),
            vmem_limit_bytes=48 * 1024 * 1024,
        ),
    )(x, w1p, b1p, w2p, b2p)

    return out_padded[:B, :OUTPUT_DIM]


def init_params(key):
    """Deterministic init mimicking nn.Linear default (uniform +/- 1/sqrt(fan_in))."""
    k1, k2, k3, k4 = jax.random.split(key, 4)
    bound1 = 1.0 / math.sqrt(INPUT_DIM)
    bound2 = 1.0 / math.sqrt(HIDDEN_DIM)
    # Stored as (in, out) = transpose of PyTorch's (out, in) weight layout.
    w1 = jax.random.uniform(k1, (INPUT_DIM, HIDDEN_DIM), jnp.float32,
                            -bound1, bound1)
    b1 = jax.random.uniform(k2, (1, HIDDEN_DIM), jnp.float32, -bound1, bound1)
    w2 = jax.random.uniform(k3, (HIDDEN_DIM, OUTPUT_DIM), jnp.float32,
                            -bound2, bound2)
    b2 = jax.random.uniform(k4, (1, OUTPUT_DIM), jnp.float32, -bound2, bound2)
    return w1, b1, w2, b2


if __name__ == "__main__":
    key = jax.random.PRNGKey(0)
    kx, kp = jax.random.split(key)

    batch = 64
    x = jax.random.normal(kx, (batch, INPUT_DIM), jnp.float32)
    w1, b1, w2, b2 = init_params(kp)

    # Small batch tile so the demo actually exercises a multi-step grid
    # (64 rows / 16-row tiles -> 4 pipelined grid steps).
    out = forward_net(x, w1, b1, w2, b2, block_b=16)
    out = jax.block_until_ready(out)

    # Reference check against plain JAX (same math as the PyTorch module).
    # Tolerance loosened for bf16 MXU operands + approx-reciprocal sigmoid.
    ref = jax.nn.sigmoid(x @ w1 + b1) @ w2 + b2
    assert out.shape == (batch, OUTPUT_DIM)
    assert jnp.allclose(out, ref, atol=2e-2, rtol=2e-2), (
        float(jnp.max(jnp.abs(out - ref))))

    print("KERNEL_OK")
</pallas_src>

<mosaic_0001>
module attributes {stable_mosaic.version = 11 : i64} {
  func.func @_mlp_kernel(%arg0: i32, %arg1: memref<16x784xf32, #tpu.memory_space<vmem>>, %arg2: memref<784x256xbf16, #tpu.memory_space<vmem>>, %arg3: memref<1x256xf32, #tpu.memory_space<vmem>>, %arg4: memref<256x128xbf16, #tpu.memory_space<vmem>>, %arg5: memref<1x128xf32, #tpu.memory_space<vmem>>, %arg6: memref<16x128xf32, #tpu.memory_space<vmem>>) attributes {dimension_semantics = [#tpu.dimension_semantics<parallel>], iteration_bounds = array<i64: 4>, scalar_prefetch = 0 : i64, scratch_operands = 0 : i64, tpu.core_type = #tpu.core_type<tc>, window_params = [{transform_indices = @transform_0, window_bounds = array<i64: 16, 784>}, {pipeline_mode = #tpu.pipeline_mode<synchronous>, transform_indices = @transform_1, window_bounds = array<i64: 784, 256>}, {pipeline_mode = #tpu.pipeline_mode<synchronous>, transform_indices = @transform_2, window_bounds = array<i64: 1, 256>}, {pipeline_mode = #tpu.pipeline_mode<synchronous>, transform_indices = @transform_3, window_bounds = array<i64: 256, 128>}, {pipeline_mode = #tpu.pipeline_mode<synchronous>, transform_indices = @transform_4, window_bounds = array<i64: 1, 128>}, {transform_indices = @transform_5, window_bounds = array<i64: 16, 128>}]} {
    %c0 = arith.constant 0 : index
    %c0_0 = arith.constant 0 : index
    %0 = vector.load %arg1[%c0, %c0_0] : memref<16x784xf32, #tpu.memory_space<vmem>>, vector<16x784xf32>
    %1 = arith.truncf %0 : vector<16x784xf32> to vector<16x784xbf16>
    %c0_1 = arith.constant 0 : index
    %c0_2 = arith.constant 0 : index
    %2 = vector.load %arg2[%c0_1, %c0_2] : memref<784x256xbf16, #tpu.memory_space<vmem>>, vector<784x256xbf16>
    %cst = arith.constant dense<0.000000e+00> : vector<16x256xf32>
    %3 = tpu.matmul %1, %2, %cst {dimension_numbers = #tpu.dot_dimension_numbers<[1], [0], [0], [1], [0, 0, 1, 1], [], []>} : vector<16x784xbf16>, vector<784x256xbf16>, vector<16x256xf32> -> vector<16x256xf32>
    %c0_3 = arith.constant 0 : index
    %c0_4 = arith.constant 0 : index
    %4 = vector.load %arg3[%c0_3, %c0_4] : memref<1x256xf32, #tpu.memory_space<vmem>>, vector<1x256xf32>
    %5 = vector.broadcast %4 : vector<1x256xf32> to vector<16x256xf32>
    %6 = arith.addf %3, %5 : vector<16x256xf32>
    %cst_5 = arith.constant 0.000000e+00 : f32
    %7 = vector.broadcast %cst_5 : f32 to vector<16x256xf32>
    %8 = arith.subf %7, %6 : vector<16x256xf32>
    %9 = math.exp %8 : vector<16x256xf32>
    %cst_6 = arith.constant 1.000000e+00 : f32
    %10 = vector.broadcast %cst_6 : f32 to vector<16x256xf32>
    %11 = arith.addf %10, %9 : vector<16x256xf32>
    %12 = tpu.reciprocal %11 {approx = true} : vector<16x256xf32> -> vector<16x256xf32>
    %13 = arith.truncf %12 : vector<16x256xf32> to vector<16x256xbf16>
    %c0_7 = arith.constant 0 : index
    %c0_8 = arith.constant 0 : index
    %14 = vector.load %arg4[%c0_7, %c0_8] : memref<256x128xbf16, #tpu.memory_space<vmem>>, vector<256x128xbf16>
    %cst_9 = arith.constant dense<0.000000e+00> : vector<16x128xf32>
    %15 = tpu.matmul %13, %14, %cst_9 {dimension_numbers = #tpu.dot_dimension_numbers<[1], [0], [0], [1], [0, 0, 1, 1], [], []>} : vector<16x256xbf16>, vector<256x128xbf16>, vector<16x128xf32> -> vector<16x128xf32>
    %c0_10 = arith.constant 0 : index
    %c0_11 = arith.constant 0 : index
    %16 = vector.load %arg5[%c0_10, %c0_11] : memref<1x128xf32, #tpu.memory_space<vmem>>, vector<1x128xf32>
    %17 = vector.broadcast %16 : vector<1x128xf32> to vector<16x128xf32>
    %18 = arith.addf %15, %17 : vector<16x128xf32>
    %c0_12 = arith.constant 0 : index
    %c0_13 = arith.constant 0 : index
    %19 = vector.load %arg6[%c0_12, %c0_13] : memref<16x128xf32, #tpu.memory_space<vmem>>, vector<16x128xf32>
    tpu.vector_store %arg6[%c0_12, %c0_13], %18 {strides = array<i32>} : memref<16x128xf32, #tpu.memory_space<vmem>>, vector<16x128xf32>,
    return
  }
  func.func @transform_0(%arg0: i32) -> (i32, i32) {
    %c0_i32 = arith.constant 0 : i32
    %c0_i32_0 = arith.constant 0 : i32
    return %arg0, %c0_i32 : i32, i32
  }
  func.func @transform_1(%arg0: i32) -> (i32, i32) {
    %c0_i32 = arith.constant 0 : i32
    %c0_i32_0 = arith.constant 0 : i32
    %c0_i32_1 = arith.constant 0 : i32
    return %c0_i32, %c0_i32_0 : i32, i32
  }
  func.func @transform_2(%arg0: i32) -> (i32, i32) {
    %c0_i32 = arith.constant 0 : i32
    %c0_i32_0 = arith.constant 0 : i32
    %c0_i32_1 = arith.constant 0 : i32
    return %c0_i32, %c0_i32_0 : i32, i32
  }
  func.func @transform_3(%arg0: i32) -> (i32, i32) {
    %c0_i32 = arith.constant 0 : i32
    %c0_i32_0 = arith.constant 0 : i32
    %c0_i32_1 = arith.constant 0 : i32
    return %c0_i32, %c0_i32_0 : i32, i32
  }
  func.func @transform_4(%arg0: i32) -> (i32, i32) {
    %c0_i32 = arith.constant 0 : i32
    %c0_i32_0 = arith.constant 0 : i32
    %c0_i32_1 = arith.constant 0 : i32
    return %c0_i32, %c0_i32_0 : i32, i32
  }
  func.func @transform_5(%arg0: i32) -> (i32, i32) {
    %c0_i32 = arith.constant 0 : i32
    %c0_i32_0 = arith.constant 0 : i32
    return %arg0, %c0_i32 : i32, i32
  }
}

</mosaic_0001>

<llo_original>
// kernel: tpu_custom_call.1
$region0: #{tpu_custom_call.1}
  #allocation0 [shape = 'u32[]', space=smem, size = 0x4, offset = 0x4, fixed_abs, tag = 'smem constant byte address 0x4 - core index']
  #allocation1 [shape = 'u32[144,128]{1,0:T(1,128)}', space=vmem, size = 0x12000, scoped, tag = 'internal scratch']
  %s0 = inlined_call_operand.hbm [shape: f32[64,784], index: 0, kind: input, shape index: {}]
  %s1 = inlined_call_operand.hbm [shape: bf16[784,256], index: 1, kind: input, shape index: {}]
  %s2 = inlined_call_operand.vmem [shape: f32[1,256], index: 2, kind: input, shape index: {}]
  %s3 = inlined_call_operand.hbm [shape: bf16[256,128], index: 3, kind: input, shape index: {}]
  %s4 = inlined_call_operand.vmem [shape: f32[1,128], index: 4, kind: input, shape index: {}]
  %s5 = inlined_call_operand.hbm [shape: f32[64,128], index: 5, kind: output, shape index: {}]
  %s6 = sld [smem:[#allocation0]]
  $region65: #{tpu_custom_call.1} parent=0
    _
  %s8 = ssub.s32 1, %s6
  %s9 = scalar_select 0, %s8, %s6
  $region1: #{tpu_custom_call.1} parent=0
    #allocation2 [shape = 'u8[114688]{0}', space=vmem, size = 0x1c000, scoped, tag = 'input window, operand 0']
    #allocation3 [shape = 's32[2]{0}', space=sflag, size = 0x8, scoped, tag = 'scoped memory for tpu_custom_call.1']
    #allocation4 [shape = 's32[2]{0}', space=sflag, size = 0x8, scoped, tag = 'scoped memory for tpu_custom_call.1']
    #allocation5 [shape = 'u8[401408]{0}', space=vmem, size = 0x62000, scoped, tag = 'input window, operand 1, single buffered']
    #allocation6 [shape = 's32[1]{0}', space=sflag, size = 0x4, scoped, tag = 'scoped memory for tpu_custom_call.1']
    #allocation7 [shape = 'u8[65536]{0}', space=vmem, size = 0x10000, scoped, tag = 'input window, operand 3, single buffered']
    #allocation8 [shape = 'u8[16384]{0}', space=vmem, size = 0x4000, scoped, tag = 'output window, operand 0']
    %10 = vsyncpa [#allocation3], 0
    %s11 = scalar_lea.sflag [#allocation3], 1
    %12 = vsyncpa %s11, 0
    %13 = vsyncpa [#allocation6], 0
    %14 = vsyncpa [#allocation4], 0
    %s15 = scalar_lea.sflag [#allocation4], 1
    %16 = vsyncpa %s15, 0
    loop: start=0, step=1, limit=6
    $region2: #{tpu_custom_call.1} parent=1 // loop_pre_header
      _
    $region3: #{tpu_custom_call.1} parent=1 // loop_header
      %s18 = sphi 0, %s22
      %p19 = scmp.ge.s32.totalorder %s18, 6
      %s28 = sphi 0, %s30
      %s31 = sphi 0, %s28
      %s32 = sphi 0, %s31
      %s48 = sphi 0, %s32
      %s52 = sphi 0, %s52
      %s54 = sphi 0, %s52
      %s55 = sphi 0, %s54
      %s69 = sphi 0, %s55
      %s73 = sphi 0, %s73
      %s75 = sphi 0, %s73
      %s76 = sphi 0, %s75
      %s90 = sphi 0, %s76
      %s94 = sphi 0, %s94
      %s96 = sphi 0, %s94
      %s97 = sphi 0, %s96
      %s111 = sphi 0, %s97
      %s115 = sphi 0, %s115
      %s117 = sphi 0, %s115
      %s118 = sphi 0, %s117
      %s132 = sphi 0, %s118
      %s138 = sphi 0, %s140
      %s141 = sphi 0, %s138
      %s142 = sphi 0, %s141
      %s158 = sphi 0, %s142
    $region4: #{tpu_custom_call.1} parent=1 // loop_header_branch
      %21 = sbr.rel (%p19) target = $region8
    $region5: #{tpu_custom_call.1} parent=1 // loop_body
      %s23 = ssub.s32 %s18, 1
      %s24 = ssub.s32 %s18, 2
      %s25 = sadd.s32 %s18, 1
      %s26 = ssub.s32 %s18, %s25
      %p27 = scmp.eq.s32.totalorder %s26, 0
      %s29 = sadd.s32 %s28, 1
      %s30 = scalar_select %p27, %s28, %s29
      %p33 = pneg %p27
      %p34 = scmp.eq.s32.totalorder %s18, 3
      %p35 = por %p33, %p34
      %p36 = scmp.ne.s32.totalorder %s28, %s31
      %p37 = scmp.eq.s32.totalorder %s18, 0
      %p38 = por %p36, %p37
      %p39 = scmp.ne.s32.totalorder %s28, %s31
      %p40 = scmp.eq.s32.totalorder %s23, 3
      %p41 = por %p39, %p40
      %p42 = scmp.ne.s32.totalorder %s31, %s32
      %p43 = scmp.eq.s32.totalorder %s23, 0
      %p44 = por %p42, %p43
      %p45 = scmp.ne.s32.totalorder %s31, %s32
      %p46 = scmp.eq.s32.totalorder %s24, 3
      %p47 = por %p45, %p46
      %p49 = scmp.ne.s32.totalorder %s32, %s48
      %p50 = scmp.eq.s32.totalorder %s24, 0
      %p51 = por %p49, %p50
      %s53 = sadd.s32 %s52, 1
      %p56 = scmp.eq.s32.totalorder %s18, 3
      %p57 = scmp.ne.s32.totalorder %s52, %s54
      %p58 = scmp.eq.s32.totalorder %s18, 0
      %p59 = por %p57, %p58
      %p60 = scmp.ne.s32.totalorder %s52, %s54
      %p61 = scmp.eq.s32.totalorder %s23, 3
      %p62 = por %p60, %p61
      %p63 = scmp.ne.s32.totalorder %s54, %s55
      %p64 = scmp.eq.s32.totalorder %s23, 0
      %p65 = por %p63, %p64
      %p66 = scmp.ne.s32.totalorder %s54, %s55
      %p67 = scmp.eq.s32.totalorder %s24, 3
      %p68 = por %p66, %p67
      %p70 = scmp.ne.s32.totalorder %s55, %s69
      %p71 = scmp.eq.s32.totalorder %s24, 0
      %p72 = por %p70, %p71
      %s74 = sadd.s32 %s73, 1
      %p77 = scmp.eq.s32.totalorder %s18, 3
      %p78 = scmp.ne.s32.totalorder %s73, %s75
      %p79 = scmp.eq.s32.totalorder %s18, 0
      %p80 = por %p78, %p79
      %p81 = scmp.ne.s32.totalorder %s73, %s75
      %p82 = scmp.eq.s32.totalorder %s23, 3
      %p83 = por %p81, %p82
      %p84 = scmp.ne.s32.totalorder %s75, %s76
      %p85 = scmp.eq.s32.totalorder %s23, 0
      %p86 = por %p84, %p85
      %p87 = scmp.ne.s32.totalorder %s75, %s76
      %p88 = scmp.eq.s32.totalorder %s24, 3
      %p89 = por %p87, %p88
      %p91 = scmp.ne.s32.totalorder %s76, %s90
      %p92 = scmp.eq.s32.totalorder %s24, 0
      %p93 = por %p91, %p92
      %s95 = sadd.s32 %s94, 1
      %p98 = scmp.eq.s32.totalorder %s18, 3
      %p99 = scmp.ne.s32.totalorder %s94, %s96
      %p100 = scmp.eq.s32.totalorder %s18, 0
      %p101 = por %p99, %p100
      %p102 = scmp.ne.s32.totalorder %s94, %s96
      %p103 = scmp.eq.s32.totalorder %s23, 3
      %p104 = por %p102, %p103
      %p105 = scmp.ne.s32.totalorder %s96, %s97
      %p106 = scmp.eq.s32.totalorder %s23, 0
      %p107 = por %p105, %p106
      %p108 = scmp.ne.s32.totalorder %s96, %s97
      %p109 = scmp.eq.s32.totalorder %s24, 3
      %p110 = por %p108, %p109
      %p112 = scmp.ne.s32.totalorder %s97, %s111
      %p113 = scmp.eq.s32.totalorder %s24, 0
      %p114 = por %p112, %p113
      %s116 = sadd.s32 %s115, 1
      %p119 = scmp.eq.s32.totalorder %s18, 3
      %p120 = scmp.ne.s32.totalorder %s115, %s117
      %p121 = scmp.eq.s32.totalorder %s18, 0
      %p122 = por %p120, %p121
      %p123 = scmp.ne.s32.totalorder %s115, %s117
      %p124 = scmp.eq.s32.totalorder %s23, 3
      %p125 = por %p123, %p124
      %p126 = scmp.ne.s32.totalorder %s117, %s118
      %p127 = scmp.eq.s32.totalorder %s23, 0
      %p128 = por %p126, %p127
      %p129 = scmp.ne.s32.totalorder %s117, %s118
      %p130 = scmp.eq.s32.totalorder %s24, 3
      %p131 = por %p129, %p130
      %p133 = scmp.ne.s32.totalorder %s118, %s132
      %p134 = scmp.eq.s32.totalorder %s24, 0
      %p135 = por %p133, %p134
      %s136 = ssub.s32 %s18, %s25
      %p137 = scmp.eq.s32.totalorder %s136, 0
      %s139 = sadd.s32 %s138, 1
      %s140 = scalar_select %p137, %s138, %s139
      %p143 = pneg %p137
      %p144 = scmp.eq.s32.totalorder %s18, 3
      %p145 = por %p143, %p144
      %p146 = scmp.ne.s32.totalorder %s138, %s141
      %p147 = scmp.eq.s32.totalorder %s18, 0
      %p148 = por %p146, %p147
      %p149 = scmp.ne.s32.totalorder %s138, %s141
      %p150 = scmp.eq.s32.totalorder %s23, 3
      %p151 = por %p149, %p150
      %p152 = scmp.ne.s32.totalorder %s141, %s142
      %p153 = scmp.eq.s32.totalorder %s23, 0
      %p154 = por %p152, %p153
      %p155 = scmp.ne.s32.totalorder %s141, %s142
      %p156 = scmp.eq.s32.totalorder %s24, 3
      %p157 = por %p155, %p156
      %p159 = scmp.ne.s32.totalorder %s142, %s158
      %p160 = scmp.eq.s32.totalorder %s24, 0
      %p161 = por %p159, %p160
      %p162 = scmp.le.s32.totalorder 1, %s18
      %p163 = scmp.lt.s32.totalorder %s18, 5
      %p164 = pnand %p162, %p163
      %p165 = pneg %p164
      // Predicated region
      $region9: #{tpu_custom_call.1} parent=5 // pred_check
        _
      $region10: #{tpu_custom_call.1} parent=5 // pred_check_branch
        %167 = sbr.rel (%p164) target = $region12
      $region11: #{tpu_custom_call.1} parent=5 // pred_region
        %s168 = ssub.s32 %s18, 1
        // Predicated region
        $region13: #{tpu_custom_call.1} parent=11 // pred_check
          %p169 = pneg %p65
        $region14: #{tpu_custom_call.1} parent=11 // pred_check_branch
          %171 = sbr.rel (%p169) target = $region16
        $region15: #{tpu_custom_call.1} parent=11 // pred_region
          %s173 = ssub.s32 12544, 12544
          %174 = vsyncadd [#allocation6], %s173
          %s175 = sshll.u32 [#allocation5], 4
          %s176 = int_to_ptr.vmem [resolvable:$true] %s175
          %181 = dma.hbm_to_vmem [thread:$0]  %s1, 12544, %s176, [#allocation6], 128, 128, 8
        $region16: #{tpu_custom_call.1} parent=11 // pred_fallthru
          _
        // Predicated region
        $region17: #{tpu_custom_call.1} parent=11 // pred_check
          %p182 = pneg %p86
        $region18: #{tpu_custom_call.1} parent=11 // pred_check_branch
          %184 = sbr.rel (%p182) target = $region20
        $region19: #{tpu_custom_call.1} parent=11 // pred_region
          _
        $region20: #{tpu_custom_call.1} parent=11 // pred_fallthru
          _
        // Predicated region
        $region21: #{tpu_custom_call.1} parent=11 // pred_check
          %p185 = pneg %p107
        $region22: #{tpu_custom_call.1} parent=11 // pred_check_branch
          %187 = sbr.rel (%p185) target = $region24
        $region23: #{tpu_custom_call.1} parent=11 // pred_region
          %s189 = ssub.s32 2048, 2048
          %190 = vsyncadd [#allocation6], %s189
          %s191 = sshll.u32 [#allocation7], 4
          %s192 = int_to_ptr.vmem [resolvable:$true] %s191
          %197 = dma.hbm_to_vmem [thread:$0]  %s3, 2048, %s192, [#allocation6], 64, 64, 4
        $region24: #{tpu_custom_call.1} parent=11 // pred_fallthru
          _
        // Predicated region
        $region25: #{tpu_custom_call.1} parent=11 // pred_check
          %p198 = pneg %p128
        $region26: #{tpu_custom_call.1} parent=11 // pred_check_branch
          %200 = sbr.rel (%p198) target = $region28
        $region27: #{tpu_custom_call.1} parent=11 // pred_region
          _
        $region28: #{tpu_custom_call.1} parent=11 // pred_fallthru
          _
      $region12: #{tpu_custom_call.1} parent=5 // pred_fallthru
        _
      %p201 = scmp.lt.s32.totalorder %s18, 4
      // Predicated region
      $region29: #{tpu_custom_call.1} parent=5 // pred_check
        %p202 = pneg %p201
      $region30: #{tpu_custom_call.1} parent=5 // pred_check_branch
        %204 = sbr.rel (%p202) target = $region32
      $region31: #{tpu_custom_call.1} parent=5 // pred_region
        // Predicated region
        $region33: #{tpu_custom_call.1} parent=31 // pred_check
          %p205 = pneg %p38
        $region34: #{tpu_custom_call.1} parent=31 // pred_check_branch
          %207 = sbr.rel (%p205) target = $region36
        $region35: #{tpu_custom_call.1} parent=31 // pred_region
          %s208 = sand.u32 %s28, 1
          %s209 = scalar_lea.sflag [#allocation3], %s208
          %s210 = sand.u32 %s28, 1
          %s211 = smul.addr %s210, 112
          %s212 = scalar_lea.vmem [#allocation2], %s211
          %s213 = smul.u32 2, %s18
          %s215 = ssub.s32 1792, 1792
          %216 = vsyncadd %s209, %s215
          %s217 = smul.addr %s213, 7
          %s218 = smul.addr %s217, 128
          %s219 = scalar_lea.hbm %s0, %s218
          %s220 = sshll.u32 %s212, 4
          %s221 = int_to_ptr.vmem [resolvable:$true] %s220
          %226 = dma.hbm_to_vmem [thread:$0]  %s219, 1792, %s221, %s209, 896, 896, 56
        $region36: #{tpu_custom_call.1} parent=31 // pred_fallthru
          _
      $region32: #{tpu_custom_call.1} parent=5 // pred_fallthru
        _
      %p227 = scmp.le.s32.totalorder 1, %s18
      %p228 = scmp.lt.s32.totalorder %s18, 5
      %p229 = pnand %p227, %p228
      %p230 = pneg %p229
      // Predicated region
      $region37: #{tpu_custom_call.1} parent=5 // pred_check
        _
      $region38: #{tpu_custom_call.1} parent=5 // pred_check_branch
        %232 = sbr.rel (%p229) target = $region40
      $region39: #{tpu_custom_call.1} parent=5 // pred_region
        %s233 = ssub.s32 %s18, 1
        %s234 = sand.u32 %s31, 1
        %s235 = scalar_lea.sflag [#allocation3], %s234
        %s236 = sand.u32 %s31, 1
        %s237 = smul.addr %s236, 112
        %s238 = scalar_lea.vmem [#allocation2], %s237
        // Predicated region
        $region41: #{tpu_custom_call.1} parent=39 // pred_check
          %p239 = pneg %p44
        $region42: #{tpu_custom_call.1} parent=39 // pred_check_branch
          %241 = sbr.rel (%p239) target = $region44
        $region43: #{tpu_custom_call.1} parent=39 // pred_region
          %242 = dma.done %s235, 1792
        $region44: #{tpu_custom_call.1} parent=39 // pred_fallthru
          _
        // Predicated region
        $region45: #{tpu_custom_call.1} parent=39 // pred_check
          %p243 = pneg %p65
        $region46: #{tpu_custom_call.1} parent=39 // pred_check_branch
          %245 = sbr.rel (%p243) target = $region48
        $region47: #{tpu_custom_call.1} parent=39 // pred_region
          %246 = dma.done [#allocation6], 12544
        $region48: #{tpu_custom_call.1} parent=39 // pred_fallthru
          _
        // Predicated region
        $region49: #{tpu_custom_call.1} parent=39 // pred_check
          %p247 = pneg %p107
        $region50: #{tpu_custom_call.1} parent=39 // pred_check_branch
          %249 = sbr.rel (%p247) target = $region52
        $region51: #{tpu_custom_call.1} parent=39 // pred_region
          %250 = dma.done [#allocation6], 2048
        $region52: #{tpu_custom_call.1} parent=39 // pred_fallthru
          _
        %s251 = sand.u32 %s31, 1
        %s252 = scalar_lea.sflag [#allocation3], %s251
        %s253 = sand.u32 %s31, 1
        %s254 = smul.addr %s253, 112
        %s255 = scalar_lea.vmem [#allocation2], %s254
        %p256 = pneg %p44
        %p257 = pneg %p41
        %p258 = pneg %p65
        %p259 = pneg %p62
        %p260 = pneg %p86
        %p261 = pneg %p83
        %p262 = pneg %p107
        %p263 = pneg %p104
        %p264 = pneg %p128
        %p265 = pneg %p125
        %p266 = pneg %p154
        %p267 = pneg %p151
        %s268 = sand.u32 %s141, 1
        %s269 = scalar_lea.sflag [#allocation4], %s268
        %s270 = sand.u32 %s141, 1
        %s271 = smul.addr %s270, 16
        %s272 = scalar_lea.vmem [#allocation8], %s271
        %s273 = smul.u32 2, %s23
        %s274 = smul.u32 2, %s23
        %v276 = vld [vmem:[%s238] sm:$0xff]
        %v277 = vld [vmem:[%s238 + $0x8] sm:$0xff]
        %v278 = vld [vmem:[%s238 + $0x10] sm:$0xff]
        %v279 = vld [vmem:[%s238 + $0x18] sm:$0xff]
        %v280 = vld [vmem:[%s238 + $0x20] sm:$0xff]
        %v281 = vld [vmem:[%s238 + $0x28] sm:$0xff]
        %v282 = vld [vmem:[%s238 + $0x30] sm:$0xff]
        %v283 = vld [vmem:[%s238 + $0x38] sm:$0xff]
        %v284 = vld [vmem:[%s238 + $0x40] sm:$0xff]
        %v285 = vld [vmem:[%s238 + $0x48] sm:$0xff]
        %v286 = vld [vmem:[%s238 + $0x50] sm:$0xff]
        %v287 = vld [vmem:[%s238 + $0x58] sm:$0xff]
        %v288 = vld [vmem:[%s238 + $0x60] sm:$0xff]
        %v289 = vld [vmem:[%s238 + $0x68] sm:$0xff]
        %v290 = vpack.c.bf16 %v283, %v276
        %v291 = vpack.c.bf16 %v284, %v277
        %v292 = vpack.c.bf16 %v285, %v278
        %v293 = vpack.c.bf16 %v286, %v279
        %v294 = vpack.c.bf16 %v287, %v280
        %v295 = vpack.c.bf16 %v288, %v281
        %v296 = vpack.c.bf16 %v289, %v282
        %v297 = vld [vmem:[#allocation5] sm:$0xff]
        %v298 = vld [vmem:[#allocation5 + $0x8] sm:$0xff]
        %v299 = vld [vmem:[#allocation5 + $0x10] sm:$0xff]
        %v300 = vld [vmem:[#allocation5 + $0x18] sm:$0xff]
        %v301 = vld [vmem:[#allocation5 + $0x20] sm:$0xff]
        %v302 = vld [vmem:[#allocation5 + $0x28] sm:$0xff]
        %v303 = vld [vmem:[#allocation5 + $0x30] sm:$0xff]
        %v304 = vld [vmem:[#allocation5 + $0x38] sm:$0xff]
        %v305 = vld [vmem:[#allocation5 + $0x40] sm:$0xff]
        %v306 = vld [vmem:[#allocation5 + $0x48] sm:$0xff]
        %v307 = vld [vmem:[#allocation5 + $0x50] sm:$0xff]
        %v308 = vld [vmem:[#allocation5 + $0x58] sm:$0xff]
        %v309 = vld [vmem:[#allocation5 + $0x60] sm:$0xff]
        %v310 = vld [vmem:[#allocation5 + $0x68] sm:$0xff]
        %v311 = vld [vmem:[#allocation5 + $0x70] sm:$0xff]
        %v312 = vld [vmem:[#allocation5 + $0x78] sm:$0xff]
        %v313 = vld [vmem:[#allocation5 + $0x80] sm:$0xff]
        %v314 = vld [vmem:[#allocation5 + $0x88] sm:$0xff]
        %v315 = vld [vmem:[#allocation5 + $0x90] sm:$0xff]
        %v316 = vld [vmem:[#allocation5 + $0x98] sm:$0xff]
        %v317 = vld [vmem:[#allocation5 + $0xa0] sm:$0xff]
        %v318 = vld [vmem:[#allocation5 + $0xa8] sm:$0xff]
        %v319 = vld [vmem:[#allocation5 + $0xb0] sm:$0xff]
        %v320 = vld [vmem:[#allocation5 + $0xb8] sm:$0xff]
        %v321 = vld [vmem:[#allocation5 + $0xc0] sm:$0xff]
        %v322 = vld [vmem:[#allocation5 + $0xc8] sm:$0xff]
        %v323 = vld [vmem:[#allocation5 + $0xd0] sm:$0xff]
        %v324 = vld [vmem:[#allocation5 + $0xd8] sm:$0xff]
        %v325 = vld [vmem:[#allocation5 + $0xe0] sm:$0xff]
        %v326 = vld [vmem:[#allocation5 + $0xe8] sm:$0xff]
        %v327 = vld [vmem:[#allocation5 + $0xf0] sm:$0xff]
        %v328 = vld [vmem:[#allocation5 + $0xf8] sm:$0xff]
        %v329 = vld [vmem:[#allocation5 + $0x100] sm:$0xff]
        %v330 = vld [vmem:[#allocation5 + $0x108] sm:$0xff]
        %v331 = vld [vmem:[#allocation5 + $0x110] sm:$0xff]
        %v332 = vld [vmem:[#allocation5 + $0x118] sm:$0xff]
        %v333 = vld [vmem:[#allocation5 + $0x120] sm:$0xff]
        %v334 = vld [vmem:[#allocation5 + $0x128] sm:$0xff]
        %v335 = vld [vmem:[#allocation5 + $0x130] sm:$0xff]
        %v336 = vld [vmem:[#allocation5 + $0x138] sm:$0xff]
        %v337 = vld [vmem:[#allocation5 + $0x140] sm:$0xff]
        %v338 = vld [vmem:[#allocation5 + $0x148] sm:$0xff]
        %v339 = vld [vmem:[#allocation5 + $0x150] sm:$0xff]
        %v340 = vld [vmem:[#allocation5 + $0x158] sm:$0xff]
        %v341 = vld [vmem:[#allocation5 + $0x160] sm:$0xff]
        %v342 = vld [vmem:[#allocation5 + $0x168] sm:$0xff]
        %v343 = vld [vmem:[#allocation5 + $0x170] sm:$0xff]
        %v344 = vld [vmem:[#allocation5 + $0x178] sm:$0xff]
        %v345 = vld [vmem:[#allocation5 + $0x180] sm:$0xff]
        %v346 = vld [vmem:[#allocation5 + $0x188] sm:$0xff]
        %v347 = vld [vmem:[#allocation5 + $0x190] sm:$0xff]
        %v348 = vld [vmem:[#allocation5 + $0x198] sm:$0xff]
        %v349 = vld [vmem:[#allocation5 + $0x1a0] sm:$0xff]
        %v350 = vld [vmem:[#allocation5 + $0x1a8] sm:$0xff]
        %v351 = vld [vmem:[#allocation5 + $0x1b0] sm:$0xff]
        %v352 = vld [vmem:[#allocation5 + $0x1b8] sm:$0xff]
        %v353 = vld [vmem:[#allocation5 + $0x1c0] sm:$0xff]
        %v354 = vld [vmem:[#allocation5 + $0x1c8] sm:$0xff]
        %v355 = vld [vmem:[#allocation5 + $0x1d0] sm:$0xff]
        %v356 = vld [vmem:[#allocation5 + $0x1d8] sm:$0xff]
        %v357 = vld [vmem:[#allocation5 + $0x1e0] sm:$0xff]
        %v358 = vld [vmem:[#allocation5 + $0x1e8] sm:$0xff]
        %v359 = vld [vmem:[#allocation5 + $0x1f0] sm:$0xff]
        %v360 = vld [vmem:[#allocation5 + $0x1f8] sm:$0xff]
        %v361 = vld [vmem:[#allocation5 + $0x200] sm:$0xff]
        %v362 = vld [vmem:[#allocation5 + $0x208] sm:$0xff]
        %v363 = vld [vmem:[#allocation5 + $0x210] sm:$0xff]
        %v364 = vld [vmem:[#allocation5 + $0x218] sm:$0xff]
        %v365 = vld [vmem:[#allocation5 + $0x220] sm:$0xff]
        %v366 = vld [vmem:[#allocation5 + $0x228] sm:$0xff]
        %v367 = vld [vmem:[#allocation5 + $0x230] sm:$0xff]
        %v368 = vld [vmem:[#allocation5 + $0x238] sm:$0xff]
        %v369 = vld [vmem:[#allocation5 + $0x240] sm:$0xff]
        %v370 = vld [vmem:[#allocation5 + $0x248] sm:$0xff]
        %v371 = vld [vmem:[#allocation5 + $0x250] sm:$0xff]
        %v372 = vld [vmem:[#allocation5 + $0x258] sm:$0xff]
        %v373 = vld [vmem:[#allocation5 + $0x260] sm:$0xff]
        %v374 = vld [vmem:[#allocation5 + $0x268] sm:$0xff]
        %v375 = vld [vmem:[#allocation5 + $0x270] sm:$0xff]
        %v376 = vld [vmem:[#allocation5 + $0x278] sm:$0xff]
        %v377 = vld [vmem:[#allocation5 + $0x280] sm:$0xff]
        %v378 = vld [vmem:[#allocation5 + $0x288] sm:$0xff]
        %v379 = vld [vmem:[#allocation5 + $0x290] sm:$0xff]
        %v380 = vld [vmem:[#allocation5 + $0x298] sm:$0xff]
        %v381 = vld [vmem:[#allocation5 + $0x2a0] sm:$0xff]
        %v382 = vld [vmem:[#allocation5 + $0x2a8] sm:$0xff]
        %v383 = vld [vmem:[#allocation5 + $0x2b0] sm:$0xff]
        %v384 = vld [vmem:[#allocation5 + $0x2b8] sm:$0xff]
        %v385 = vld [vmem:[#allocation5 + $0x2c0] sm:$0xff]
        %v386 = vld [vmem:[#allocation5 + $0x2c8] sm:$0xff]
        %v387 = vld [vmem:[#allocation5 + $0x2d0] sm:$0xff]
        %v388 = vld [vmem:[#allocation5 + $0x2d8] sm:$0xff]
        %v389 = vld [vmem:[#allocation5 + $0x2e0] sm:$0xff]
        %v390 = vld [vmem:[#allocation5 + $0x2e8] sm:$0xff]
        %v391 = vld [vmem:[#allocation5 + $0x2f0] sm:$0xff]
        %v392 = vld [vmem:[#allocation5 + $0x2f8] sm:$0xff]
        %v393 = vld [vmem:[#allocation5 + $0x300] sm:$0xff]
        %v394 = vld [vmem:[#allocation5 + $0x308] sm:$0xff]
        %v395 = vld [vmem:[%s2] sm:$0x3]
        %v397 = vlaneseq
        %v398 = vshrl.u32 %v397, 7
        %v399 = vsub.s32 0, %v398
        %v400 = vrot.slane %v395, %v399
        %v401 = vlaneseq
        %v402 = vshrl.u32 %v401, 7
        %v403 = vsub.s32 1, %v402
        %v404 = vrot.slane %v395, %v403
        %v505 = vunpack.c.l.b16 %v297
        %v506 = vunpack.c.h.b16 %v297
        %v507 = vunpack.c.l.b16 %v298
        %v508 = vunpack.c.h.b16 %v298
        %v509 = vunpack.c.l.b16 %v299
        %v510 = vunpack.c.h.b16 %v299
        %v511 = vunpack.c.l.b16 %v300
        %v512 = vunpack.c.h.b16 %v300
        %v513 = vunpack.c.l.b16 %v301
        %v514 = vunpack.c.h.b16 %v301
        %v515 = vunpack.c.l.b16 %v302
        %v516 = vunpack.c.h.b16 %v302
        %v517 = vunpack.c.l.b16 %v303
        %v518 = vunpack.c.h.b16 %v303
        %v519 = vunpack.c.l.b16 %v304
        %v520 = vunpack.c.h.b16 %v304
        %v521 = vunpack.c.l.b16 %v305
        %v522 = vunpack.c.h.b16 %v305
        %v523 = vunpack.c.l.b16 %v306
        %v524 = vunpack.c.h.b16 %v306
        %v525 = vunpack.c.l.b16 %v307
        %v526 = vunpack.c.h.b16 %v307
        %v527 = vunpack.c.l.b16 %v308
        %v528 = vunpack.c.h.b16 %v308
        %v529 = vunpack.c.l.b16 %v309
        %v530 = vunpack.c.h.b16 %v309
        %v531 = vunpack.c.l.b16 %v310
        %v532 = vunpack.c.h.b16 %v310
        %v533 = vunpack.c.l.b16 %v311
        %v534 = vunpack.c.h.b16 %v311
        %v535 = vunpack.c.l.b16 %v312
        %v536 = vunpack.c.h.b16 %v312
        %v537 = vunpack.c.l.b16 %v313
        %v538 = vunpack.c.h.b16 %v313
        %v539 = vunpack.c.l.b16 %v314
        %v540 = vunpack.c.h.b16 %v314
        %v541 = vunpack.c.l.b16 %v315
        %v542 = vunpack.c.h.b16 %v315
        %v543 = vunpack.c.l.b16 %v316
        %v544 = vunpack.c.h.b16 %v316
        %v545 = vunpack.c.l.b16 %v317
        %v546 = vunpack.c.h.b16 %v317
        %v547 = vunpack.c.l.b16 %v318
        %v548 = vunpack.c.h.b16 %v318
        %v549 = vunpack.c.l.b16 %v319
        %v550 = vunpack.c.h.b16 %v319
        %v551 = vunpack.c.l.b16 %v320
        %v552 = vunpack.c.h.b16 %v320
        %v553 = vunpack.c.l.b16 %v321
        %v554 = vunpack.c.h.b16 %v321
        %v555 = vunpack.c.l.b16 %v322
        %v556 = vunpack.c.h.b16 %v322
        %v557 = vunpack.c.l.b16 %v323
        %v558 = vunpack.c.h.b16 %v323
        %v559 = vunpack.c.l.b16 %v324
        %v560 = vunpack.c.h.b16 %v324
        %v561 = vunpack.c.l.b16 %v325
        %v562 = vunpack.c.h.b16 %v325
        %v563 = vunpack.c.l.b16 %v326
        %v564 = vunpack.c.h.b16 %v326
        %v565 = vunpack.c.l.b16 %v327
        %v566 = vunpack.c.h.b16 %v327
        %v567 = vunpack.c.l.b16 %v328
        %v568 = vunpack.c.h.b16 %v328
        %v569 = vunpack.c.l.b16 %v329
        %v570 = vunpack.c.h.b16 %v329
        %v571 = vunpack.c.l.b16 %v330
        %v572 = vunpack.c.h.b16 %v330
        %v573 = vunpack.c.l.b16 %v331
        %v574 = vunpack.c.h.b16 %v331
        %v575 = vunpack.c.l.b16 %v332
        %v576 = vunpack.c.h.b16 %v332
        %v577 = vunpack.c.l.b16 %v333
        %v578 = vunpack.c.h.b16 %v333
        %v579 = vunpack.c.l.b16 %v334
        %v580 = vunpack.c.h.b16 %v334
        %v581 = vunpack.c.l.b16 %v335
        %v582 = vunpack.c.h.b16 %v335
        %v583 = vunpack.c.l.b16 %v336
        %v584 = vunpack.c.h.b16 %v336
        %v585 = vunpack.c.l.b16 %v337
        %v586 = vunpack.c.h.b16 %v337
        %v587 = vunpack.c.l.b16 %v338
        %v588 = vunpack.c.h.b16 %v338
        %v589 = vunpack.c.l.b16 %v339
        %v590 = vunpack.c.h.b16 %v339
        %v591 = vunpack.c.l.b16 %v340
        %v592 = vunpack.c.h.b16 %v340
        %v593 = vunpack.c.l.b16 %v341
        %v594 = vunpack.c.h.b16 %v341
        %v595 = vunpack.c.l.b16 %v342
        %v596 = vunpack.c.h.b16 %v342
        %v597 = vunpack.c.l.b16 %v343
        %v598 = vunpack.c.h.b16 %v343
        %v599 = vunpack.c.l.b16 %v344
        %v600 = vunpack.c.h.b16 %v344
        %v601 = vunpack.c.l.b16 %v345
        %v602 = vunpack.c.h.b16 %v345
        %v603 = vunpack.c.l.b16 %v346
        %v604 = vunpack.c.h.b16 %v346
        %v605 = vunpack.c.l.b16 %v347
        %v606 = vunpack.c.h.b16 %v347
        %v607 = vunpack.c.l.b16 %v348
        %v608 = vunpack.c.h.b16 %v348
        %v609 = vunpack.c.l.b16 %v349
        %v610 = vunpack.c.h.b16 %v349
        %v611 = vunpack.c.l.b16 %v350
        %v612 = vunpack.c.h.b16 %v350
        %v613 = vunpack.c.l.b16 %v351
        %v614 = vunpack.c.h.b16 %v351
        %v615 = vunpack.c.l.b16 %v352
        %v616 = vunpack.c.h.b16 %v352
        %v617 = vunpack.c.l.b16 %v353
        %v618 = vunpack.c.h.b16 %v353
        %v619 = vunpack.c.l.b16 %v354
        %v620 = vunpack.c.h.b16 %v354
        %v621 = vunpack.c.l.b16 %v355
        %v622 = vunpack.c.h.b16 %v355
        %v623 = vunpack.c.l.b16 %v356
        %v624 = vunpack.c.h.b16 %v356
        %v625 = vunpack.c.l.b16 %v357
        %v626 = vunpack.c.h.b16 %v357
        %v627 = vunpack.c.l.b16 %v358
        %v628 = vunpack.c.h.b16 %v358
        %v629 = vunpack.c.l.b16 %v359
        %v630 = vunpack.c.h.b16 %v359
        %v631 = vunpack.c.l.b16 %v360
        %v632 = vunpack.c.h.b16 %v360
        %v633 = vunpack.c.l.b16 %v361
        %v634 = vunpack.c.h.b16 %v361
        %v635 = vunpack.c.l.b16 %v362
        %v636 = vunpack.c.h.b16 %v362
        %v637 = vunpack.c.l.b16 %v363
        %v638 = vunpack.c.h.b16 %v363
        %v639 = vunpack.c.l.b16 %v364
        %v640 = vunpack.c.h.b16 %v364
        %v641 = vunpack.c.l.b16 %v365
        %v642 = vunpack.c.h.b16 %v365
        %v643 = vunpack.c.l.b16 %v366
        %v644 = vunpack.c.h.b16 %v366
        %v645 = vunpack.c.l.b16 %v367
        %v646 = vunpack.c.h.b16 %v367
        %v647 = vunpack.c.l.b16 %v368
        %v648 = vunpack.c.h.b16 %v368
        %v649 = vunpack.c.l.b16 %v369
        %v650 = vunpack.c.h.b16 %v369
        %v651 = vunpack.c.l.b16 %v370
        %v652 = vunpack.c.h.b16 %v370
        %v653 = vunpack.c.l.b16 %v371
        %v654 = vunpack.c.h.b16 %v371
        %v655 = vunpack.c.l.b16 %v372
        %v656 = vunpack.c.h.b16 %v372
        %v657 = vunpack.c.l.b16 %v373
        %v658 = vunpack.c.h.b16 %v373
        %v659 = vunpack.c.l.b16 %v374
        %v660 = vunpack.c.h.b16 %v374
        %v661 = vunpack.c.l.b16 %v375
        %v662 = vunpack.c.h.b16 %v375
        %v663 = vunpack.c.l.b16 %v376
        %v664 = vunpack.c.h.b16 %v376
        %v665 = vunpack.c.l.b16 %v377
        %v666 = vunpack.c.h.b16 %v377
        %v667 = vunpack.c.l.b16 %v378
        %v668 = vunpack.c.h.b16 %v378
        %v669 = vunpack.c.l.b16 %v379
        %v670 = vunpack.c.h.b16 %v379
        %v671 = vunpack.c.l.b16 %v380
        %v672 = vunpack.c.h.b16 %v380
        %v673 = vunpack.c.l.b16 %v381
        %v674 = vunpack.c.h.b16 %v381
        %v675 = vunpack.c.l.b16 %v382
        %v676 = vunpack.c.h.b16 %v382
        %v677 = vunpack.c.l.b16 %v383
        %v678 = vunpack.c.h.b16 %v383
        %v679 = vunpack.c.l.b16 %v384
        %v680 = vunpack.c.h.b16 %v384
        %v681 = vunpack.c.l.b16 %v385
        %v682 = vunpack.c.h.b16 %v385
        %v683 = vunpack.c.l.b16 %v386
        %v684 = vunpack.c.h.b16 %v386
        %v685 = vunpack.c.l.b16 %v387
        %v686 = vunpack.c.h.b16 %v387
        %v687 = vunpack.c.l.b16 %v388
        %v688 = vunpack.c.h.b16 %v388
        %v689 = vunpack.c.l.b16 %v389
        %v690 = vunpack.c.h.b16 %v389
        %v691 = vunpack.c.l.b16 %v390
        %v692 = vunpack.c.h.b16 %v390
        %v693 = vunpack.c.l.b16 %v391
        %v694 = vunpack.c.h.b16 %v391
        %v695 = vunpack.c.l.b16 %v392
        %v696 = vunpack.c.h.b16 %v392
        %v697 = vunpack.c.l.b16 %v393
        %v698 = vunpack.c.h.b16 %v393
        %v699 = vunpack.c.l.b16 %v394
        %v700 = vunpack.c.h.b16 %v394
        %v701 = vpack.c.b16 %v507, %v505
        %v702 = vpack.c.b16 %v508, %v506
        %v703 = vpack.c.b16 %v511, %v509
        %v704 = vpack.c.b16 %v512, %v510
        %v705 = vpack.c.b16 %v515, %v513
        %v706 = vpack.c.b16 %v516, %v514
        %v707 = vpack.c.b16 %v519, %v517
        %v708 = vpack.c.b16 %v520, %v518
        %v709 = vpack.c.b16 %v523, %v521
        %v710 = vpack.c.b16 %v524, %v522
        %v711 = vpack.c.b16 %v527, %v525
        %v712 = vpack.c.b16 %v528, %v526
        %v713 = vpack.c.b16 %v531, %v529
        %v714 = vpack.c.b16 %v532, %v530
        %v715 = vpack.c.b16 %v535, %v533
        %v716 = vpack.c.b16 %v536, %v534
        %v717 = vpack.c.b16 %v539, %v537
        %v718 = vpack.c.b16 %v540, %v538
        %v719 = vpack.c.b16 %v543, %v541
        %v720 = vpack.c.b16 %v544, %v542
        %v721 = vpack.c.b16 %v547, %v545
        %v722 = vpack.c.b16 %v548, %v546
        %v723 = vpack.c.b16 %v551, %v549
        %v724 = vpack.c.b16 %v552, %v550
        %v725 = vpack.c.b16 %v555, %v553
        %v726 = vpack.c.b16 %v556, %v554
        %v727 = vpack.c.b16 %v559, %v557
        %v728 = vpack.c.b16 %v560, %v558
        %v729 = vpack.c.b16 %v563, %v561
        %v730 = vpack.c.b16 %v564, %v562
        %v731 = vpack.c.b16 %v567, %v565
        %v732 = vpack.c.b16 %v568, %v566
        %v733 = vpack.c.b16 %v571, %v569
        %v734 = vpack.c.b16 %v572, %v570
        %v735 = vpack.c.b16 %v575, %v573
        %v736 = vpack.c.b16 %v576, %v574
        %v737 = vpack.c.b16 %v579, %v577
        %v738 = vpack.c.b16 %v580, %v578
        %v739 = vpack.c.b16 %v583, %v581
        %v740 = vpack.c.b16 %v584, %v582
        %v741 = vpack.c.b16 %v587, %v585
        %v742 = vpack.c.b16 %v588, %v586
        %v743 = vpack.c.b16 %v591, %v589
        %v744 = vpack.c.b16 %v592, %v590
        %v745 = vpack.c.b16 %v595, %v593
        %v746 = vpack.c.b16 %v596, %v594
        %v747 = vpack.c.b16 %v599, %v597
        %v748 = vpack.c.b16 %v600, %v598
        %v749 = vpack.c.b16 %v603, %v601
        %v750 = vpack.c.b16 %v604, %v602
        %v751 = vpack.c.b16 %v607, %v605
        %v752 = vpack.c.b16 %v608, %v606
        %v753 = vpack.c.b16 %v611, %v609
        %v754 = vpack.c.b16 %v612, %v610
        %v755 = vpack.c.b16 %v615, %v613
        %v756 = vpack.c.b16 %v616, %v614
        %v757 = vpack.c.b16 %v619, %v617
        %v758 = vpack.c.b16 %v620, %v618
        %v759 = vpack.c.b16 %v623, %v621
        %v760 = vpack.c.b16 %v624, %v622
        %v761 = vpack.c.b16 %v627, %v625
        %v762 = vpack.c.b16 %v628, %v626
        %v763 = vpack.c.b16 %v631, %v629
        %v764 = vpack.c.b16 %v632, %v630
        %v765 = vpack.c.b16 %v635, %v633
        %v766 = vpack.c.b16 %v636, %v634
        %v767 = vpack.c.b16 %v639, %v637
        %v768 = vpack.c.b16 %v640, %v638
        %v769 = vpack.c.b16 %v643, %v641
        %v770 = vpack.c.b16 %v644, %v642
        %v771 = vpack.c.b16 %v647, %v645
        %v772 = vpack.c.b16 %v648, %v646
        %v773 = vpack.c.b16 %v651, %v649
        %v774 = vpack.c.b16 %v652, %v650
        %v775 = vpack.c.b16 %v655, %v653
        %v776 = vpack.c.b16 %v656, %v654
        %v777 = vpack.c.b16 %v659, %v657
        %v778 = vpack.c.b16 %v660, %v658
        %v779 = vpack.c.b16 %v663, %v661
        %v780 = vpack.c.b16 %v664, %v662
        %v781 = vpack.c.b16 %v667, %v665
        %v782 = vpack.c.b16 %v668, %v666
        %v783 = vpack.c.b16 %v671, %v669
        %v784 = vpack.c.b16 %v672, %v670
        %v785 = vpack.c.b16 %v675, %v673
        %v786 = vpack.c.b16 %v676, %v674
        %v787 = vpack.c.b16 %v679, %v677
        %v788 = vpack.c.b16 %v680, %v678
        %v789 = vpack.c.b16 %v683, %v681
        %v790 = vpack.c.b16 %v684, %v682
        %v791 = vpack.c.b16 %v687, %v685
        %v792 = vpack.c.b16 %v688, %v686
        %v793 = vpack.c.b16 %v691, %v689
        %v794 = vpack.c.b16 %v692, %v690
        %v795 = vpack.c.b16 %v695, %v693
        %v796 = vpack.c.b16 %v696, %v694
        %v797 = vpack.c.b16 %v699, %v697
        %v798 = vpack.c.b16 %v700, %v698
        %vm897 = vcmask 130048
        %v899 = vsel %vm897, %v296, 0
        %901 = vmatprep.subr.bf16.mxu0 %v702
        %902 = vmatpush1.bf16.msra.mxu0 %v701
        %903 = vmatprep.subr.bf16.mxu0 %v704
        %904 = vmatpush1.bf16.msra.mxu0 %v703
        %905 = vmatprep.subr.bf16.mxu0 %v706
        %906 = vmatpush1.bf16.msra.mxu0 %v705
        %907 = vmatprep.subr.bf16.mxu0 %v708
        %908 = vmatpush1.bf16.msra.mxu0 %v707
        %909 = vmatprep.subr.bf16.mxu0 %v710
        %910 = vmatpush1.bf16.msra.mxu0 %v709
        %911 = vmatprep.subr.bf16.mxu0 %v712
        %912 = vmatpush1.bf16.msra.mxu0 %v711
        %913 = vmatprep.subr.bf16.mxu0 %v714
        %914 = vmatpush1.bf16.msra.mxu0 %v713
        %915 = vmatprep.subr.bf16.mxu0 %v716
        %916 = vmatpush1.bf16.msra.mxu0 %v715
        %917 = vmatprep.subr.bf16.mxu0 %v718
        %918 = vmatpush1.bf16.msra.mxu0 %v717
        %919 = vmatprep.subr.bf16.mxu0 %v720
        %920 = vmatpush1.bf16.msra.mxu0 %v719
        %921 = vmatprep.subr.bf16.mxu0 %v722
        %922 = vmatpush1.bf16.msra.mxu0 %v721
        %923 = vmatprep.subr.bf16.mxu0 %v724
        %924 = vmatpush1.bf16.msra.mxu0 %v723
        %925 = vmatprep.subr.bf16.mxu0 %v726
        %926 = vmatpush1.bf16.msra.mxu0 %v725
        %927 = vmatprep.subr.bf16.mxu0 %v728
        %928 = vmatpush1.bf16.msra.mxu0 %v727
        %929 = vmatprep.subr.bf16.mxu0 %v730
        %930 = vmatpush1.bf16.msra.mxu0 %v729
        %931 = vmatprep.subr.bf16.mxu0 %v732
        %932 = vmatpush1.bf16.msra.mxu0 %v731
        %933 = vmatprep.mubr.bf16.mxu0 %v291
        %934 = vmatmul.mubr.bf16.gmra.mrb[0].mxu0 %v290
        %v935 = vpop.f32.mrb[0].mxu0
        %v936 = vadd.f32 %v400, %v935
        %v937 = vpop.f32.mrb[0].mxu0
        %v938 = vadd.f32 %v404, %v937
        %v939 = vpop.f32.mrb[0].mxu0
        %v940 = vadd.f32 %v400, %v939
        %v941 = vpop.f32.mrb[0].mxu0
        %v942 = vadd.f32 %v404, %v941
        %943 = vdwg.mxu0
        %944 = vmatprep.subr.bf16.mxu0 %v734
        %945 = vmatpush1.bf16.msra.mxu0 %v733
        %946 = vmatprep.subr.bf16.mxu0 %v736
        %947 = vmatpush1.bf16.msra.mxu0 %v735
        %948 = vmatprep.subr.bf16.mxu0 %v738
        %949 = vmatpush1.bf16.msra.mxu0 %v737
        %950 = vmatprep.subr.bf16.mxu0 %v740
        %951 = vmatpush1.bf16.msra.mxu0 %v739
        %952 = vmatprep.subr.bf16.mxu0 %v742
        %953 = vmatpush1.bf16.msra.mxu0 %v741
        %954 = vmatprep.subr.bf16.mxu0 %v744
        %955 = vmatpush1.bf16.msra.mxu0 %v743
        %956 = vmatprep.subr.bf16.mxu0 %v746
        %957 = vmatpush1.bf16.msra.mxu0 %v745
        %958 = vmatprep.subr.bf16.mxu0 %v748
        %959 = vmatpush1.bf16.msra.mxu0 %v747
        %960 = vmatprep.subr.bf16.mxu0 %v750
        %961 = vmatpush1.bf16.msra.mxu0 %v749
        %962 = vmatprep.subr.bf16.mxu0 %v752
        %963 = vmatpush1.bf16.msra.mxu0 %v751
        %964 = vmatprep.subr.bf16.mxu0 %v754
        %965 = vmatpush1.bf16.msra.mxu0 %v753
        %966 = vmatprep.subr.bf16.mxu0 %v756
        %967 = vmatpush1.bf16.msra.mxu0 %v755
        %968 = vmatprep.subr.bf16.mxu0 %v758
        %969 = vmatpush1.bf16.msra.mxu0 %v757
        %970 = vmatprep.subr.bf16.mxu0 %v760
        %971 = vmatpush1.bf16.msra.mxu0 %v759
        %972 = vmatprep.subr.bf16.mxu0 %v762
        %973 = vmatpush1.bf16.msra.mxu0 %v761
        %974 = vmatprep.subr.bf16.mxu0 %v764
        %975 = vmatpush1.bf16.msra.mxu0 %v763
        %976 = vmatprep.mubr.bf16.mxu0 %v293
        %977 = vmatmul.mubr.bf16.gmra.mrb[0].mxu0 %v292
        %v978 = vpop.f32.mrb[0].mxu0
        %v979 = vadd.f32 %v936, %v978
        %v980 = vpop.f32.mrb[0].mxu0
        %v981 = vadd.f32 %v938, %v980
        %v982 = vpop.f32.mrb[0].mxu0
        %v983 = vadd.f32 %v940, %v982
        %v984 = vpop.f32.mrb[0].mxu0
        %v985 = vadd.f32 %v942, %v984
        %986 = vdwg.mxu0
        %987 = vmatprep.subr.bf16.mxu0 %v766
        %988 = vmatpush1.bf16.msra.mxu0 %v765
        %989 = vmatprep.subr.bf16.mxu0 %v768
        %990 = vmatpush1.bf16.msra.mxu0 %v767
        %991 = vmatprep.subr.bf16.mxu0 %v770
        %992 = vmatpush1.bf16.msra.mxu0 %v769
        %993 = vmatprep.subr.bf16.mxu0 %v772
        %994 = vmatpush1.bf16.msra.mxu0 %v771
        %995 = vmatprep.subr.bf16.mxu0 %v774
        %996 = vmatpush1.bf16.msra.mxu0 %v773
        %997 = vmatprep.subr.bf16.mxu0 %v776
        %998 = vmatpush1.bf16.msra.mxu0 %v775
        %999 = vmatprep.subr.bf16.mxu0 %v778
        %1000 = vmatpush1.bf16.msra.mxu0 %v777
        %1001 = vmatprep.subr.bf16.mxu0 %v780
        %1002 = vmatpush1.bf16.msra.mxu0 %v779
        %1003 = vmatprep.subr.bf16.mxu0 %v782
        %1004 = vmatpush1.bf16.msra.mxu0 %v781
        %1005 = vmatprep.subr.bf16.mxu0 %v784
        %1006 = vmatpush1.bf16.msra.mxu0 %v783
        %1007 = vmatprep.subr.bf16.mxu0 %v786
        %1008 = vmatpush1.bf16.msra.mxu0 %v785
        %1009 = vmatprep.subr.bf16.mxu0 %v788
        %1010 = vmatpush1.bf16.msra.mxu0 %v787
        %1011 = vmatprep.subr.bf16.mxu0 %v790
        %1012 = vmatpush1.bf16.msra.mxu0 %v789
        %1013 = vmatprep.subr.bf16.mxu0 %v792
        %1014 = vmatpush1.bf16.msra.mxu0 %v791
        %1015 = vmatprep.subr.bf16.mxu0 %v794
        %1016 = vmatpush1.bf16.msra.mxu0 %v793
        %1017 = vmatprep.subr.bf16.mxu0 %v796
        %1018 = vmatpush1.bf16.msra.mxu0 %v795
        %1019 = vmatprep.mubr.bf16.mxu0 %v295
        %1020 = vmatmul.mubr.bf16.gmra.mrb[0].mxu0 %v294
        %v1021 = vpop.f32.mrb[0].mxu0
        %v1022 = vadd.f32 %v979, %v1021
        %v1023 = vpop.f32.mrb[0].mxu0
        %v1024 = vadd.f32 %v981, %v1023
        %v1025 = vpop.f32.mrb[0].mxu0
        %v1026 = vadd.f32 %v983, %v1025
        %v1027 = vpop.f32.mrb[0].mxu0
        %v1028 = vadd.f32 %v985, %v1027
        %1029 = vdwg.mxu0
        %1030 = vmatprep.subr.bf16.mxu0 %v798
        %1031 = vmatpush1.bf16.msra.mxu0 %v797
        %1032 = vmatprep.subr.bf16.mxu0 0
        %1033 = vmatpush1.bf16.msra.mxu0 0
        %1034 = vmatprep.subr.bf16.mxu0 0
        %1035 = vmatpush1.bf16.msra.mxu0 0
        %1036 = vmatprep.subr.bf16.mxu0 0
        %1037 = vmatpush1.bf16.msra.mxu0 0
        %1038 = vmatprep.subr.bf16.mxu0 0
        %1039 = vmatpush1.bf16.msra.mxu0 0
        %1040 = vmatprep.subr.bf16.mxu0 0
        %1041 = vmatpush1.bf16.msra.mxu0 0
        %1042 = vmatprep.subr.bf16.mxu0 0
        %1043 = vmatpush1.bf16.msra.mxu0 0
        %1044 = vmatprep.subr.bf16.mxu0 0
        %1045 = vmatpush1.bf16.msra.mxu0 0
        %1046 = vmatprep.subr.bf16.mxu0 0
        %1047 = vmatpush1.bf16.msra.mxu0 0
        %1048 = vmatprep.subr.bf16.mxu0 0
        %1049 = vmatpush1.bf16.msra.mxu0 0
        %1050 = vmatprep.subr.bf16.mxu0 0
        %1051 = vmatpush1.bf16.msra.mxu0 0
        %1052 = vmatprep.subr.bf16.mxu0 0
        %1053 = vmatpush1.bf16.msra.mxu0 0
        %1054 = vmatprep.subr.bf16.mxu0 0
        %1055 = vmatpush1.bf16.msra.mxu0 0
        %1056 = vmatprep.subr.bf16.mxu0 0
        %1057 = vmatpush1.bf16.msra.mxu0 0
        %1058 = vmatprep.subr.bf16.mxu0 0
        %1059 = vmatpush1.bf16.msra.mxu0 0
        %1060 = vmatprep.subr.bf16.mxu0 0
        %1061 = vmatpush1.bf16.msra.mxu0 0
        %1062 = vmatprep.mubr.bf16.mxu0 0
        %1063 = vmatmul.mubr.bf16.gmra.mrb[0].mxu0 %v899
        %v1064 = vpop.f32.mrb[0].mxu0
        %v1065 = vadd.f32 %v1022, %v1064
        %v1066 = vpop.f32.mrb[0].mxu0
        %v1067 = vadd.f32 %v1024, %v1066
        %v1068 = vpop.f32.mrb[0].mxu0
        %v1069 = vadd.f32 %v1026, %v1068
        %v1070 = vpop.f32.mrb[0].mxu0
        %v1071 = vadd.f32 %v1028, %v1070
        %1072 = vdwg.mxu0
        %v1073 = vsub.f32 0.0, %v1065
        %v1074 = vsub.f32 0.0, %v1067
        %v1075 = vsub.f32 0.0, %v1069
        %v1076 = vsub.f32 0.0, %v1071
        %v1077 = vmul.f32 %v1073, 1.442695
        %v1078 = vpow.pop %v1077
        %v1079 = vmul.f32 %v1074, 1.442695
        %v1080 = vpow.pop %v1079
        %v1081 = vmul.f32 %v1075, 1.442695
        %v1082 = vpow.pop %v1081
        %v1083 = vmul.f32 %v1076, 1.442695
        %v1084 = vpow.pop %v1083
        %v1085 = vadd.f32 %v1078, 1.0
        %v1086 = vadd.f32 %v1080, 1.0
        %v1087 = vadd.f32 %v1082, 1.0
        %v1088 = vadd.f32 %v1084, 1.0
        %v1089 = vrcp.pop %v1085
        %v1090 = vrcp.pop %v1086
        %v1091 = vrcp.pop %v1087
        %v1092 = vrcp.pop %v1088
        %v1093 = vpack.c.bf16 %v1091, %v1089
        %v1094 = vpack.c.bf16 %v1092, %v1090
        %v1095 = vld [vmem:[#allocation7] sm:$0xf]
        %v1096 = vld [vmem:[#allocation7 + $0x4] sm:$0xf]
        %v1097 = vld [vmem:[#allocation7 + $0x8] sm:$0xf]
        %v1098 = vld [vmem:[#allocation7 + $0xc] sm:$0xf]
        %v1099 = vld [vmem:[#allocation7 + $0x10] sm:$0xf]
        %v1100 = vld [vmem:[#allocation7 + $0x14] sm:$0xf]
        %v1101 = vld [vmem:[#allocation7 + $0x18] sm:$0xf]
        %v1102 = vld [vmem:[#allocation7 + $0x1c] sm:$0xf]
        %v1103 = vld [vmem:[#allocation7 + $0x20] sm:$0xf]
        %v1104 = vld [vmem:[#allocation7 + $0x24] sm:$0xf]
        %v1105 = vld [vmem:[#allocation7 + $0x28] sm:$0xf]
        %v1106 = vld [vmem:[#allocation7 + $0x2c] sm:$0xf]
        %v1107 = vld [vmem:[#allocation7 + $0x30] sm:$0xf]
        %v1108 = vld [vmem:[#allocation7 + $0x34] sm:$0xf]
        %v1109 = vld [vmem:[#allocation7 + $0x38] sm:$0xf]
        %v1110 = vld [vmem:[#allocation7 + $0x3c] sm:$0xf]
        %v1111 = vld [vmem:[#allocation7 + $0x40] sm:$0xf]
        %v1112 = vld [vmem:[#allocation7 + $0x44] sm:$0xf]
        %v1113 = vld [vmem:[#allocation7 + $0x48] sm:$0xf]
        %v1114 = vld [vmem:[#allocation7 + $0x4c] sm:$0xf]
        %v1115 = vld [vmem:[#allocation7 + $0x50] sm:$0xf]
        %v1116 = vld [vmem:[#allocation7 + $0x54] sm:$0xf]
        %v1117 = vld [vmem:[#allocation7 + $0x58] sm:$0xf]
        %v1118 = vld [vmem:[#allocation7 + $0x5c] sm:$0xf]
        %v1119 = vld [vmem:[#allocation7 + $0x60] sm:$0xf]
        %v1120 = vld [vmem:[#allocation7 + $0x64] sm:$0xf]
        %v1121 = vld [vmem:[#allocation7 + $0x68] sm:$0xf]
        %v1122 = vld [vmem:[#allocation7 + $0x6c] sm:$0xf]
        %v1123 = vld [vmem:[#allocation7 + $0x70] sm:$0xf]
        %v1124 = vld [vmem:[#allocation7 + $0x74] sm:$0xf]
        %v1125 = vld [vmem:[#allocation7 + $0x78] sm:$0xf]
        %v1126 = vld [vmem:[#allocation7 + $0x7c] sm:$0xf]
        %v1127 = vld [vmem:[%s4] sm:$0x1]
        %v1129 = vlaneseq
        %v1130 = vshrl.u32 %v1129, 7
        %v1131 = vsub.s32 0, %v1130
        %v1132 = vrot.slane %v1127, %v1131
        %v1166 = vunpack.c.l.b16 %v1095
        %v1167 = vunpack.c.l.b16 %v1096
        %v1168 = vunpack.c.l.b16 %v1097
        %v1169 = vunpack.c.l.b16 %v1098
        %v1170 = vunpack.c.l.b16 %v1099
        %v1171 = vunpack.c.l.b16 %v1100
        %v1172 = vunpack.c.l.b16 %v1101
        %v1173 = vunpack.c.l.b16 %v1102
        %v1174 = vunpack.c.l.b16 %v1103
        %v1175 = vunpack.c.l.b16 %v1104
        %v1176 = vunpack.c.l.b16 %v1105
        %v1177 = vunpack.c.l.b16 %v1106
        %v1178 = vunpack.c.l.b16 %v1107
        %v1179 = vunpack.c.l.b16 %v1108
        %v1180 = vunpack.c.l.b16 %v1109
        %v1181 = vunpack.c.l.b16 %v1110
        %v1182 = vunpack.c.l.b16 %v1111
        %v1183 = vunpack.c.l.b16 %v1112
        %v1184 = vunpack.c.l.b16 %v1113
        %v1185 = vunpack.c.l.b16 %v1114
        %v1186 = vunpack.c.l.b16 %v1115
        %v1187 = vunpack.c.l.b16 %v1116
        %v1188 = vunpack.c.l.b16 %v1117
        %v1189 = vunpack.c.l.b16 %v1118
        %v1190 = vunpack.c.l.b16 %v1119
        %v1191 = vunpack.c.l.b16 %v1120
        %v1192 = vunpack.c.l.b16 %v1121
        %v1193 = vunpack.c.l.b16 %v1122
        %v1194 = vunpack.c.l.b16 %v1123
        %v1195 = vunpack.c.l.b16 %v1124
        %v1196 = vunpack.c.l.b16 %v1125
        %v1197 = vunpack.c.l.b16 %v1126
        %v1198 = vpack.c.b16 %v1167, %v1166
        %v1199 = vpack.c.b16 %v1169, %v1168
        %v1200 = vpack.c.b16 %v1171, %v1170
        %v1201 = vpack.c.b16 %v1173, %v1172
        %v1202 = vpack.c.b16 %v1175, %v1174
        %v1203 = vpack.c.b16 %v1177, %v1176
        %v1204 = vpack.c.b16 %v1179, %v1178
        %v1205 = vpack.c.b16 %v1181, %v1180
        %v1206 = vpack.c.b16 %v1183, %v1182
        %v1207 = vpack.c.b16 %v1185, %v1184
        %v1208 = vpack.c.b16 %v1187, %v1186
        %v1209 = vpack.c.b16 %v1189, %v1188
        %v1210 = vpack.c.b16 %v1191, %v1190
        %v1211 = vpack.c.b16 %v1193, %v1192
        %v1212 = vpack.c.b16 %v1195, %v1194
        %v1213 = vpack.c.b16 %v1197, %v1196
        %1230 = vmatprep.subr.bf16.mxu0 0
        %1231 = vmatpush1.bf16.msra.mxu0 %v1198
        %1232 = vmatprep.subr.bf16.mxu0 0
        %1233 = vmatpush1.bf16.msra.mxu0 %v1199
        %1234 = vmatprep.subr.bf16.mxu0 0
        %1235 = vmatpush1.bf16.msra.mxu0 %v1200
        %1236 = vmatprep.subr.bf16.mxu0 0
        %1237 = vmatpush1.bf16.msra.mxu0 %v1201
        %1238 = vmatprep.subr.bf16.mxu0 0
        %1239 = vmatpush1.bf16.msra.mxu0 %v1202
        %1240 = vmatprep.subr.bf16.mxu0 0
        %1241 = vmatpush1.bf16.msra.mxu0 %v1203
        %1242 = vmatprep.subr.bf16.mxu0 0
        %1243 = vmatpush1.bf16.msra.mxu0 %v1204
        %1244 = vmatprep.subr.bf16.mxu0 0
        %1245 = vmatpush1.bf16.msra.mxu0 %v1205
        %1246 = vmatprep.subr.bf16.mxu0 0
        %1247 = vmatpush1.bf16.msra.mxu0 %v1206
        %1248 = vmatprep.subr.bf16.mxu0 0
        %1249 = vmatpush1.bf16.msra.mxu0 %v1207
        %1250 = vmatprep.subr.bf16.mxu0 0
        %1251 = vmatpush1.bf16.msra.mxu0 %v1208
        %1252 = vmatprep.subr.bf16.mxu0 0
        %1253 = vmatpush1.bf16.msra.mxu0 %v1209
        %1254 = vmatprep.subr.bf16.mxu0 0
        %1255 = vmatpush1.bf16.msra.mxu0 %v1210
        %1256 = vmatprep.subr.bf16.mxu0 0
        %1257 = vmatpush1.bf16.msra.mxu0 %v1211
        %1258 = vmatprep.subr.bf16.mxu0 0
        %1259 = vmatpush1.bf16.msra.mxu0 %v1212
        %1260 = vmatprep.subr.bf16.mxu0 0
        %1261 = vmatpush1.bf16.msra.mxu0 %v1213
        %1262 = vmatprep.mubr.bf16.mxu0 %v1094
        %1263 = vmatmul.mubr.bf16.gmra.mrb[0].mxu0 %v1093
        %v1264 = vpop.f32.mrb[0].mxu0
        %v1265 = vadd.f32 %v1132, %v1264
        %v1266 = vpop.f32.mrb[0].mxu0
        %v1267 = vpop.f32.mrb[0].mxu0
        %v1268 = vadd.f32 %v1132, %v1267
        %v1269 = vpop.f32.mrb[0].mxu0
        %1270 = vdwg.mxu0
        %1271 = vst [vmem:[%s272] sm:$0xff] %v1265
        %1272 = vst [vmem:[%s272 + $0x8] sm:$0xff] %v1268
        %s1273 = sand.u32 %s141, 1
        %s1274 = scalar_lea.sflag [#allocation4], %s1273
        %s1275 = sand.u32 %s141, 1
        %s1276 = smul.addr %s1275, 16
        %s1277 = scalar_lea.vmem [#allocation8], %s1276
        // Predicated region
        $region53: #{tpu_custom_call.1} parent=39 // pred_check
          %p1278 = pneg %p151
        $region54: #{tpu_custom_call.1} parent=39 // pred_check_branch
          %1280 = sbr.rel (%p1278) target = $region56
        $region55: #{tpu_custom_call.1} parent=39 // pred_region
          %s1281 = smul.u32 2, %s23
          %s1283 = ssub.s32 256, 256
          %1284 = vsyncadd %s1274, %s1283
          %s1285 = smul.addr %s1281, 128
          %s1286 = scalar_lea.hbm %s5, %s1285
          %s1287 = sshll.u32 %s1277, 4
          %s1288 = int_to_ptr.vmem [resolvable:$true] %s1287
          %1293 = dma.vmem_to_hbm [thread:$0]  %s1288, 256, %s1286, %s1274, 128, 128, 8
        $region56: #{tpu_custom_call.1} parent=39 // pred_fallthru
          _
      $region40: #{tpu_custom_call.1} parent=5 // pred_fallthru
        _
      %p1294 = scmp.le.s32.totalorder 2, %s18
      // Predicated region
      $region57: #{tpu_custom_call.1} parent=5 // pred_check
        %p1295 = pneg %p1294
      $region58: #{tpu_custom_call.1} parent=5 // pred_check_branch
        %1297 = sbr.rel (%p1295) target = $region60
      $region59: #{tpu_custom_call.1} parent=5 // pred_region
        %s1298 = ssub.s32 %s18, 2
        // Predicated region
        $region61: #{tpu_custom_call.1} parent=59 // pred_check
          %p1299 = pneg %p157
        $region62: #{tpu_custom_call.1} parent=59 // pred_check_branch
          %1301 = sbr.rel (%p1299) target = $region64
        $region63: #{tpu_custom_call.1} parent=59 // pred_region
          %s1302 = sand.u32 %s142, 1
          %s1303 = scalar_lea.sflag [#allocation4], %s1302
          %s1304 = sand.u32 %s142, 1
          %s1305 = smul.addr %s1304, 16
          %s1306 = scalar_lea.vmem [#allocation8], %s1305
          %1307 = dma.done %s1303, 256
        $region64: #{tpu_custom_call.1} parent=59 // pred_fallthru
          _
      $region60: #{tpu_custom_call.1} parent=5 // pred_fallthru
        _
    $region6: #{tpu_custom_call.1} parent=1 // loop_footer
      %s22 = sadd.s32 1, %s18
    $region7: #{tpu_custom_call.1} parent=1 // loop_footer_branch
      %17 = sbr.rel target = $region3
    $region8: #{tpu_custom_call.1} parent=1 // loop_exit
      _
    %1308 = vsyncpa [#allocation3], 1
    %s1309 = scalar_lea.sflag [#allocation3], 1
    %1310 = vsyncpa %s1309, 1
    %1311 = vsyncpa [#allocation6], 1
    %1312 = vsyncpa [#allocation4], 1
    %s1313 = scalar_lea.sflag [#allocation4], 1
    %1314 = vsyncpa %s1313, 1

</llo_original>
